<compile_context>
chip_gen: v5e
topology: v5e:2x2
jax: 0.10.0
libtpu: 0.0.40
codegen_flags: <defaults>
</compile_context>

<pallas_src>
import jax
import jax.numpy as jnp
from jax import lax
from jax.experimental import pallas as pl
from jax.experimental.pallas import tpu as pltpu

WIN = 7
HALO = WIN - 1                                   # 6
NP = WIN * WIN                                   # 49
K1 = 0.01
K2 = 0.03
DATA_RANGE = 1.0
C1P = (K1 * DATA_RANGE) ** 2 * NP * NP           # C1 scaled by NP^2
C2P = (K2 * DATA_RANGE) ** 2 * NP * (NP - 1)     # C2 scaled by NP*(NP-1)

_TH_TARGET = 256            # bigger strips buy nothing (kernel is VALU-bound)
_LIVE_PLANES = 24           # conservative count of live f32 (TH, Wp) planes
_SMALL_IMAGE_ELEMS = 64 * 64


def _cdiv(a, b):
    return -(-a // b)


def _round_up(a, b):
    return _cdiv(a, b) * b


def _vmem_limit_bytes():
    """Generation-aware scoped-VMEM limit (v5e/v6e: 128 MiB, v7x: 64 MiB/TC)."""
    cap = 64 * 1024 * 1024
    try:
        info = pltpu.get_tpu_info()
        c = getattr(info, "vmem_capacity_bytes", None)
        if c:
            cap = int(c)
    except Exception:
        pass
    return min((cap * 3) // 4, 96 * 1024 * 1024)


def _make_kernel(TH, Wp, Hv, Wv, num_strips):
    """Per-strip kernel: a TH-row bulk block + an 8-row halo block per input."""
    rem_valid = Hv - (num_strips - 1) * TH        # valid rows of the last strip

    def box7(p):
        # p: (TH + 8, Wp). Separable 7x7 box sum -> (TH, Wp).
        # Sublane (dy) phase first, dyadic: 4 VPU adds (was 6), on TH+6 rows.
        s2 = lax.slice(p, (0, 0), (TH + 5, Wp)) + lax.slice(p, (1, 0), (TH + 6, Wp))
        s4 = lax.slice(s2, (0, 0), (TH, Wp)) + lax.slice(s2, (2, 0), (TH + 2, Wp))
        c = s4 + lax.slice(s2, (4, 0), (TH + 4, Wp)) + lax.slice(p, (6, 0), (TH + 6, Wp))
        # Lane (dx) phase on the reduced TH rows, dyadic: 4 XLU rolls + 4 adds.
        # Wrap-around only pollutes columns >= Wv, which are masked after the
        # reduction (wrapped windows stay self-consistent -> no Inf/NaN).
        r2 = c + pltpu.roll(c, Wp - 1, axis=1)             # shift by -1
        r4 = r2 + pltpu.roll(r2, Wp - 2, axis=1)           # shift by -2
        return r4 + pltpu.roll(r2, Wp - 4, axis=1) + pltpu.roll(c, Wp - 6, axis=1)

    def fold8(m):
        # Sublane-only partial reduction (TH, Wp) -> aligned (8, Wp) tile.
        acc = lax.slice(m, (0, 0), (8, Wp))
        for r0 in range(8, TH, 8):
            acc = acc + lax.slice(m, (r0, 0), (r0 + 8, Wp))
        return acc

    def kernel(xb_ref, yb_ref, xh_ref, yh_ref, out_ref, xfull, yfull):
        i = pl.program_id(0)

        # Stage bulk + halo (both auto-pipelined by BlockSpec) into one
        # contiguous (TH + 8, Wp) plane: pure vld/vst traffic, off the VALU.
        xfull[pl.ds(0, TH), :] = xb_ref[...]
        xfull[pl.ds(TH, 8), :] = xh_ref[...]
        yfull[pl.ds(0, TH), :] = yb_ref[...]
        yfull[pl.ds(TH, 8), :] = yh_ref[...]
        x = xfull[...]
        y = yfull[...]

        # Raw 7x7 window sums (1/NP and cov_norm are folded into C1P / C2P).
        sx = box7(x)
        sy = box7(y)
        sxx = box7(x * x)
        syy = box7(y * y)
        sxy = box7(x * y)

        sxsy = sx * sy
        sq = sx * sx + sy * sy
        a1 = 2.0 * sxsy + C1P
        b1 = sq + C1P
        a2 = 2.0 * (NP * sxy - sxsy) + C2P
        b2 = NP * (sxx + syy) - sq + C2P
        s_map = (a1 * a2) * pl.reciprocal(b1 * b2, approx=True)
        # TODO(synk): switch to an exact divide (or one Newton step) if
        # bit-closer parity with skimage is ever needed (~1e-3 rel. error now).

        colmask8 = lax.broadcasted_iota(jnp.int32, (8, Wp), 1) < Wv

        def write(m):
            # Column mask applied only to the reduced (8, Wp) accumulator.
            out_ref[...] = jnp.where(colmask8, fold8(m), 0.0)

        def write_row_masked():
            rows = lax.broadcasted_iota(jnp.int32, (TH, Wp), 0)
            write(jnp.where(rows < rem_valid, s_map, 0.0))

        if rem_valid == TH:
            write(s_map)                      # every strip fully valid, no mask
        elif num_strips == 1:
            write_row_masked()
        else:
            @pl.when(i < num_strips - 1)
            def _():
                write(s_map)                  # hot path: no row mask

            @pl.when(i == num_strips - 1)
            def _():
                write_row_masked()            # cold path: last strip only

    return kernel


def ssim_loss(img1, img2, *, strip_rows=None, force_pallas=False):
    """Mirrors SSIMLoss.forward: squeeze, skimage-default SSIM, return 1 - SSIM."""
    x = jnp.squeeze(img1).astype(jnp.float32)
    y = jnp.squeeze(img2).astype(jnp.float32)
    assert x.ndim == 2 and x.shape == y.shape, "expects inputs that squeeze to 2-D images"
    H, W = x.shape
    assert H >= WIN and W >= WIN, "image must be at least 7x7"

    # Tiny images: pallas_call / grid / lane-padding overhead dominates -> JAX.
    if not force_pallas and H * W <= _SMALL_IMAGE_ELEMS:
        return _ssim_2d(x, y)

    Hv = H - HALO                        # valid window positions (skimage crop)
    Wv = W - HALO
    Wp = _round_up(W, 128)               # lane-dense padded width

    vmem_limit = _vmem_limit_bytes()
    th_vmem = (vmem_limit // (_LIVE_PLANES * 4 * Wp)) // 8 * 8

    if strip_rows is not None:
        TH = _round_up(max(1, int(strip_rows)), 8)
    else:
        TH = max(8, min(th_vmem, _TH_TARGET))
        TH = min(TH, _round_up(_cdiv(Hv, 2), 8))   # >=2 strips when possible (v7x)
    TH = max(8, min(TH, _round_up(Hv, 8)))
    num_strips = _cdiv(Hv, TH)
    Hp = num_strips * TH + 8             # room for every strip's 8-row halo block

    xp = jnp.pad(x, ((0, Hp - H), (0, Wp - W)))
    yp = jnp.pad(y, ((0, Hp - H), (0, Wp - W)))

    kernel = _make_kernel(TH, Wp, Hv, Wv, num_strips)
    nhb = TH // 8                        # halo block-index stride (8-row blocks)

    partial = pl.pallas_call(
        kernel,
        out_shape=jax.ShapeDtypeStruct((num_strips * 8, Wp), jnp.float32),
        grid_spec=pltpu.PrefetchScalarGridSpec(
            num_scalar_prefetch=0,
            grid=(num_strips,),
            in_specs=[
                pl.BlockSpec((TH, Wp), lambda i: (i, 0)),             # x bulk
                pl.BlockSpec((TH, Wp), lambda i: (i, 0)),             # y bulk
                pl.BlockSpec((8, Wp), lambda i: ((i + 1) * nhb, 0)),  # x halo
                pl.BlockSpec((8, Wp), lambda i: ((i + 1) * nhb, 0)),  # y halo
            ],
            out_specs=pl.BlockSpec((8, Wp), lambda i: (i, 0)),
            scratch_shapes=[
                pltpu.VMEM((TH + 8, Wp), jnp.float32),
                pltpu.VMEM((TH + 8, Wp), jnp.float32),
            ],
        ),
        compiler_params=pltpu.CompilerParams(
            dimension_semantics=("parallel",),   # strips independent -> both v7x TCs
            vmem_limit_bytes=vmem_limit,
        ),
    )(xp, yp, xp, yp)

    mssim = jnp.sum(partial) / (Hv * Wv)
    return (1.0 - mssim).astype(jnp.float32)


def _ssim_2d(x, y):
    """Pure-JAX skimage SSIM loss (direct 49-tap) on 2-D f32 images."""
    H, W = x.shape
    Hv, Wv = H - HALO, W - HALO

    def wmean(a):
        s = jnp.zeros((Hv, Wv), jnp.float32)
        for dy in range(WIN):
            for dx in range(WIN):
                s = s + lax.slice(a, (dy, dx), (dy + Hv, dx + Wv))
        return s * (1.0 / NP)

    ux, uy = wmean(x), wmean(y)
    uxx, uyy, uxy = wmean(x * x), wmean(y * y), wmean(x * y)
    cov_norm = NP / (NP - 1.0)
    vx = cov_norm * (uxx - ux * ux)
    vy = cov_norm * (uyy - uy * uy)
    vxy = cov_norm * (uxy - ux * uy)
    C1 = (K1 * DATA_RANGE) ** 2
    C2 = (K2 * DATA_RANGE) ** 2
    S = ((2.0 * ux * uy + C1) * (2.0 * vxy + C2)) / ((ux * ux + uy * uy + C1) * (vx + vy + C2))
    return (1.0 - jnp.mean(S)).astype(jnp.float32)


def _ssim_loss_ref(img1, img2):
    return _ssim_2d(jnp.squeeze(img1).astype(jnp.float32),
                    jnp.squeeze(img2).astype(jnp.float32))


if __name__ == "__main__":
    key = jax.random.PRNGKey(0)
    k1, k2, k3, k4, k5, k6 = jax.random.split(key, 6)

    # NCHW like the PyTorch module receives; squeeze() -> (16, 16).
    img1 = jax.random.uniform(k1, (1, 1, 16, 16), dtype=jnp.float32)
    img2 = jax.random.uniform(k2, (1, 1, 16, 16), dtype=jnp.float32)

    # 1) tiny-image fast path
    loss = jax.block_until_ready(ssim_loss(img1, img2))
    ref = jax.block_until_ready(_ssim_loss_ref(img1, img2))
    assert abs(float(loss) - float(ref)) < 5e-3, (float(loss), float(ref))

    # 2) same image through the Pallas path (2 strips, last-strip row mask)
    loss_p = jax.block_until_ready(ssim_loss(img1, img2, force_pallas=True))
    assert abs(float(loss_p) - float(ref)) < 5e-3, (float(loss_p), float(ref))

    # identical images -> SSIM == 1 -> loss == 0 (kernel path)
    zero = jax.block_until_ready(ssim_loss(img1, img1, force_pallas=True))
    assert abs(float(zero)) < 1e-3, float(zero)

    # 3) multi-strip path: explicit strip height, halo blocks, row-mask strip
    a = jax.random.uniform(k3, (1, 1, 40, 24), dtype=jnp.float32)
    b = jax.random.uniform(k4, (1, 1, 40, 24), dtype=jnp.float32)
    loss2 = jax.block_until_ready(ssim_loss(a, b, strip_rows=16, force_pallas=True))
    ref2 = jax.block_until_ready(_ssim_loss_ref(a, b))
    assert abs(float(loss2) - float(ref2)) < 5e-3, (float(loss2), float(ref2))

    # 4) default auto-sizing (>=2 strips) on a wider image -> kernel path
    c = jax.random.uniform(k5, (1, 1, 72, 200), dtype=jnp.float32)
    d = jax.random.uniform(k6, (1, 1, 72, 200), dtype=jnp.float32)
    loss3 = jax.block_until_ready(ssim_loss(c, d))
    ref3 = jax.block_until_ready(_ssim_loss_ref(c, d))
    assert abs(float(loss3) - float(ref3)) < 5e-3, (float(loss3), float(ref3))

    print("KERNEL_OK")
</pallas_src>

<mosaic_0001>
module attributes {stable_mosaic.version = 11 : i64} {
  func.func @kernel(%arg0: i32, %arg1: memref<8x128xf32, #tpu.memory_space<vmem>>, %arg2: memref<8x128xf32, #tpu.memory_space<vmem>>, %arg3: memref<8x128xf32, #tpu.memory_space<vmem>>, %arg4: memref<8x128xf32, #tpu.memory_space<vmem>>, %arg5: memref<8x128xf32, #tpu.memory_space<vmem>>, %arg6: memref<16x128xf32, #tpu.memory_space<vmem>>, %arg7: memref<16x128xf32, #tpu.memory_space<vmem>>) attributes {dimension_semantics = [#tpu.dimension_semantics<parallel>], iteration_bounds = array<i64: 2>, scalar_prefetch = 0 : i64, scratch_operands = 2 : i64, tpu.core_type = #tpu.core_type<tc>, window_params = [{transform_indices = @transform_0, window_bounds = array<i64: 8, 128>}, {transform_indices = @transform_1, window_bounds = array<i64: 8, 128>}, {transform_indices = @transform_2, window_bounds = array<i64: 8, 128>}, {transform_indices = @transform_3, window_bounds = array<i64: 8, 128>}, {transform_indices = @transform_4, window_bounds = array<i64: 8, 128>}]} {
    %c0 = arith.constant 0 : index
    %c0_0 = arith.constant 0 : index
    %0 = vector.load %arg1[%c0, %c0_0] : memref<8x128xf32, #tpu.memory_space<vmem>>, vector<8x128xf32>
    %c0_1 = arith.constant 0 : index
    %c0_2 = arith.constant 0 : index
    %1 = vector.load %arg6[%c0_1, %c0_2] : memref<16x128xf32, #tpu.memory_space<vmem>>, vector<8x128xf32>
    tpu.vector_store %arg6[%c0_1, %c0_2], %0 {strides = array<i32>} : memref<16x128xf32, #tpu.memory_space<vmem>>, vector<8x128xf32>,
    %c0_3 = arith.constant 0 : index
    %c0_4 = arith.constant 0 : index
    %2 = vector.load %arg3[%c0_3, %c0_4] : memref<8x128xf32, #tpu.memory_space<vmem>>, vector<8x128xf32>
    %c8 = arith.constant 8 : index
    %c0_5 = arith.constant 0 : index
    %3 = vector.load %arg6[%c8, %c0_5] : memref<16x128xf32, #tpu.memory_space<vmem>>, vector<8x128xf32>
    tpu.vector_store %arg6[%c8, %c0_5], %2 {strides = array<i32>} : memref<16x128xf32, #tpu.memory_space<vmem>>, vector<8x128xf32>,
    %c0_6 = arith.constant 0 : index
    %c0_7 = arith.constant 0 : index
    %4 = vector.load %arg2[%c0_6, %c0_7] : memref<8x128xf32, #tpu.memory_space<vmem>>, vector<8x128xf32>
    %c0_8 = arith.constant 0 : index
    %c0_9 = arith.constant 0 : index
    %5 = vector.load %arg7[%c0_8, %c0_9] : memref<16x128xf32, #tpu.memory_space<vmem>>, vector<8x128xf32>
    tpu.vector_store %arg7[%c0_8, %c0_9], %4 {strides = array<i32>} : memref<16x128xf32, #tpu.memory_space<vmem>>, vector<8x128xf32>,
    %c0_10 = arith.constant 0 : index
    %c0_11 = arith.constant 0 : index
    %6 = vector.load %arg4[%c0_10, %c0_11] : memref<8x128xf32, #tpu.memory_space<vmem>>, vector<8x128xf32>
    %c8_12 = arith.constant 8 : index
    %c0_13 = arith.constant 0 : index
    %7 = vector.load %arg7[%c8_12, %c0_13] : memref<16x128xf32, #tpu.memory_space<vmem>>, vector<8x128xf32>
    tpu.vector_store %arg7[%c8_12, %c0_13], %6 {strides = array<i32>} : memref<16x128xf32, #tpu.memory_space<vmem>>, vector<8x128xf32>,
    %c0_14 = arith.constant 0 : index
    %c0_15 = arith.constant 0 : index
    %8 = vector.load %arg6[%c0_14, %c0_15] : memref<16x128xf32, #tpu.memory_space<vmem>>, vector<16x128xf32>
    %c0_16 = arith.constant 0 : index
    %c0_17 = arith.constant 0 : index
    %9 = vector.load %arg7[%c0_16, %c0_17] : memref<16x128xf32, #tpu.memory_space<vmem>>, vector<16x128xf32>
    %10 = vector.extract_strided_slice %8 {offsets = [0, 0], sizes = [13, 128], strides = [1, 1]} : vector<16x128xf32> to vector<13x128xf32>
    %11 = vector.extract_strided_slice %8 {offsets = [1, 0], sizes = [13, 128], strides = [1, 1]} : vector<16x128xf32> to vector<13x128xf32>
    %12 = arith.addf %10, %11 : vector<13x128xf32>
    %13 = vector.extract_strided_slice %12 {offsets = [0, 0], sizes = [8, 128], strides = [1, 1]} : vector<13x128xf32> to vector<8x128xf32>
    %14 = vector.extract_strided_slice %12 {offsets = [2, 0], sizes = [8, 128], strides = [1, 1]} : vector<13x128xf32> to vector<8x128xf32>
    %15 = arith.addf %13, %14 : vector<8x128xf32>
    %16 = vector.extract_strided_slice %12 {offsets = [4, 0], sizes = [8, 128], strides = [1, 1]} : vector<13x128xf32> to vector<8x128xf32>
    %17 = arith.addf %15, %16 : vector<8x128xf32>
    %18 = vector.extract_strided_slice %8 {offsets = [6, 0], sizes = [8, 128], strides = [1, 1]} : vector<16x128xf32> to vector<8x128xf32>
    %19 = arith.addf %17, %18 : vector<8x128xf32>
    %c127_i32 = arith.constant 127 : i32
    %20 = tpu.dynamic_rotate %19 by %c127_i32 dim 1 : vector<8x128xf32>, i32 -> vector<8x128xf32>
    %21 = arith.addf %19, %20 : vector<8x128xf32>
    %c126_i32 = arith.constant 126 : i32
    %22 = tpu.dynamic_rotate %21 by %c126_i32 dim 1 : vector<8x128xf32>, i32 -> vector<8x128xf32>
    %23 = arith.addf %21, %22 : vector<8x128xf32>
    %c124_i32 = arith.constant 124 : i32
    %24 = tpu.dynamic_rotate %21 by %c124_i32 dim 1 : vector<8x128xf32>, i32 -> vector<8x128xf32>
    %25 = arith.addf %23, %24 : vector<8x128xf32>
    %c122_i32 = arith.constant 122 : i32
    %26 = tpu.dynamic_rotate %19 by %c122_i32 dim 1 : vector<8x128xf32>, i32 -> vector<8x128xf32>
    %27 = arith.addf %25, %26 : vector<8x128xf32>
    %28 = vector.extract_strided_slice %9 {offsets = [0, 0], sizes = [13, 128], strides = [1, 1]} : vector<16x128xf32> to vector<13x128xf32>
    %29 = vector.extract_strided_slice %9 {offsets = [1, 0], sizes = [13, 128], strides = [1, 1]} : vector<16x128xf32> to vector<13x128xf32>
    %30 = arith.addf %28, %29 : vector<13x128xf32>
    %31 = vector.extract_strided_slice %30 {offsets = [0, 0], sizes = [8, 128], strides = [1, 1]} : vector<13x128xf32> to vector<8x128xf32>
    %32 = vector.extract_strided_slice %30 {offsets = [2, 0], sizes = [8, 128], strides = [1, 1]} : vector<13x128xf32> to vector<8x128xf32>
    %33 = arith.addf %31, %32 : vector<8x128xf32>
    %34 = vector.extract_strided_slice %30 {offsets = [4, 0], sizes = [8, 128], strides = [1, 1]} : vector<13x128xf32> to vector<8x128xf32>
    %35 = arith.addf %33, %34 : vector<8x128xf32>
    %36 = vector.extract_strided_slice %9 {offsets = [6, 0], sizes = [8, 128], strides = [1, 1]} : vector<16x128xf32> to vector<8x128xf32>
    %37 = arith.addf %35, %36 : vector<8x128xf32>
    %c127_i32_18 = arith.constant 127 : i32
    %38 = tpu.dynamic_rotate %37 by %c127_i32_18 dim 1 : vector<8x128xf32>, i32 -> vector<8x128xf32>
    %39 = arith.addf %37, %38 : vector<8x128xf32>
    %c126_i32_19 = arith.constant 126 : i32
    %40 = tpu.dynamic_rotate %39 by %c126_i32_19 dim 1 : vector<8x128xf32>, i32 -> vector<8x128xf32>
    %41 = arith.addf %39, %40 : vector<8x128xf32>
    %c124_i32_20 = arith.constant 124 : i32
    %42 = tpu.dynamic_rotate %39 by %c124_i32_20 dim 1 : vector<8x128xf32>, i32 -> vector<8x128xf32>
    %43 = arith.addf %41, %42 : vector<8x128xf32>
    %c122_i32_21 = arith.constant 122 : i32
    %44 = tpu.dynamic_rotate %37 by %c122_i32_21 dim 1 : vector<8x128xf32>, i32 -> vector<8x128xf32>
    %45 = arith.addf %43, %44 : vector<8x128xf32>
    %46 = arith.mulf %8, %8 : vector<16x128xf32>
    %47 = vector.extract_strided_slice %46 {offsets = [0, 0], sizes = [13, 128], strides = [1, 1]} : vector<16x128xf32> to vector<13x128xf32>
    %48 = vector.extract_strided_slice %46 {offsets = [1, 0], sizes = [13, 128], strides = [1, 1]} : vector<16x128xf32> to vector<13x128xf32>
    %49 = arith.addf %47, %48 : vector<13x128xf32>
    %50 = vector.extract_strided_slice %49 {offsets = [0, 0], sizes = [8, 128], strides = [1, 1]} : vector<13x128xf32> to vector<8x128xf32>
    %51 = vector.extract_strided_slice %49 {offsets = [2, 0], sizes = [8, 128], strides = [1, 1]} : vector<13x128xf32> to vector<8x128xf32>
    %52 = arith.addf %50, %51 : vector<8x128xf32>
    %53 = vector.extract_strided_slice %49 {offsets = [4, 0], sizes = [8, 128], strides = [1, 1]} : vector<13x128xf32> to vector<8x128xf32>
    %54 = arith.addf %52, %53 : vector<8x128xf32>
    %55 = vector.extract_strided_slice %46 {offsets = [6, 0], sizes = [8, 128], strides = [1, 1]} : vector<16x128xf32> to vector<8x128xf32>
    %56 = arith.addf %54, %55 : vector<8x128xf32>
    %c127_i32_22 = arith.constant 127 : i32
    %57 = tpu.dynamic_rotate %56 by %c127_i32_22 dim 1 : vector<8x128xf32>, i32 -> vector<8x128xf32>
    %58 = arith.addf %56, %57 : vector<8x128xf32>
    %c126_i32_23 = arith.constant 126 : i32
    %59 = tpu.dynamic_rotate %58 by %c126_i32_23 dim 1 : vector<8x128xf32>, i32 -> vector<8x128xf32>
    %60 = arith.addf %58, %59 : vector<8x128xf32>
    %c124_i32_24 = arith.constant 124 : i32
    %61 = tpu.dynamic_rotate %58 by %c124_i32_24 dim 1 : vector<8x128xf32>, i32 -> vector<8x128xf32>
    %62 = arith.addf %60, %61 : vector<8x128xf32>
    %c122_i32_25 = arith.constant 122 : i32
    %63 = tpu.dynamic_rotate %56 by %c122_i32_25 dim 1 : vector<8x128xf32>, i32 -> vector<8x128xf32>
    %64 = arith.addf %62, %63 : vector<8x128xf32>
    %65 = arith.mulf %9, %9 : vector<16x128xf32>
    %66 = vector.extract_strided_slice %65 {offsets = [0, 0], sizes = [13, 128], strides = [1, 1]} : vector<16x128xf32> to vector<13x128xf32>
    %67 = vector.extract_strided_slice %65 {offsets = [1, 0], sizes = [13, 128], strides = [1, 1]} : vector<16x128xf32> to vector<13x128xf32>
    %68 = arith.addf %66, %67 : vector<13x128xf32>
    %69 = vector.extract_strided_slice %68 {offsets = [0, 0], sizes = [8, 128], strides = [1, 1]} : vector<13x128xf32> to vector<8x128xf32>
    %70 = vector.extract_strided_slice %68 {offsets = [2, 0], sizes = [8, 128], strides = [1, 1]} : vector<13x128xf32> to vector<8x128xf32>
    %71 = arith.addf %69, %70 : vector<8x128xf32>
    %72 = vector.extract_strided_slice %68 {offsets = [4, 0], sizes = [8, 128], strides = [1, 1]} : vector<13x128xf32> to vector<8x128xf32>
    %73 = arith.addf %71, %72 : vector<8x128xf32>
    %74 = vector.extract_strided_slice %65 {offsets = [6, 0], sizes = [8, 128], strides = [1, 1]} : vector<16x128xf32> to vector<8x128xf32>
    %75 = arith.addf %73, %74 : vector<8x128xf32>
    %c127_i32_26 = arith.constant 127 : i32
    %76 = tpu.dynamic_rotate %75 by %c127_i32_26 dim 1 : vector<8x128xf32>, i32 -> vector<8x128xf32>
    %77 = arith.addf %75, %76 : vector<8x128xf32>
    %c126_i32_27 = arith.constant 126 : i32
    %78 = tpu.dynamic_rotate %77 by %c126_i32_27 dim 1 : vector<8x128xf32>, i32 -> vector<8x128xf32>
    %79 = arith.addf %77, %78 : vector<8x128xf32>
    %c124_i32_28 = arith.constant 124 : i32
    %80 = tpu.dynamic_rotate %77 by %c124_i32_28 dim 1 : vector<8x128xf32>, i32 -> vector<8x128xf32>
    %81 = arith.addf %79, %80 : vector<8x128xf32>
    %c122_i32_29 = arith.constant 122 : i32
    %82 = tpu.dynamic_rotate %75 by %c122_i32_29 dim 1 : vector<8x128xf32>, i32 -> vector<8x128xf32>
    %83 = arith.addf %81, %82 : vector<8x128xf32>
    %84 = arith.mulf %8, %9 : vector<16x128xf32>
    %85 = vector.extract_strided_slice %84 {offsets = [0, 0], sizes = [13, 128], strides = [1, 1]} : vector<16x128xf32> to vector<13x128xf32>
    %86 = vector.extract_strided_slice %84 {offsets = [1, 0], sizes = [13, 128], strides = [1, 1]} : vector<16x128xf32> to vector<13x128xf32>
    %87 = arith.addf %85, %86 : vector<13x128xf32>
    %88 = vector.extract_strided_slice %87 {offsets = [0, 0], sizes = [8, 128], strides = [1, 1]} : vector<13x128xf32> to vector<8x128xf32>
    %89 = vector.extract_strided_slice %87 {offsets = [2, 0], sizes = [8, 128], strides = [1, 1]} : vector<13x128xf32> to vector<8x128xf32>
    %90 = arith.addf %88, %89 : vector<8x128xf32>
    %91 = vector.extract_strided_slice %87 {offsets = [4, 0], sizes = [8, 128], strides = [1, 1]} : vector<13x128xf32> to vector<8x128xf32>
    %92 = arith.addf %90, %91 : vector<8x128xf32>
    %93 = vector.extract_strided_slice %84 {offsets = [6, 0], sizes = [8, 128], strides = [1, 1]} : vector<16x128xf32> to vector<8x128xf32>
    %94 = arith.addf %92, %93 : vector<8x128xf32>
    %c127_i32_30 = arith.constant 127 : i32
    %95 = tpu.dynamic_rotate %94 by %c127_i32_30 dim 1 : vector<8x128xf32>, i32 -> vector<8x128xf32>
    %96 = arith.addf %94, %95 : vector<8x128xf32>
    %c126_i32_31 = arith.constant 126 : i32
    %97 = tpu.dynamic_rotate %96 by %c126_i32_31 dim 1 : vector<8x128xf32>, i32 -> vector<8x128xf32>
    %98 = arith.addf %96, %97 : vector<8x128xf32>
    %c124_i32_32 = arith.constant 124 : i32
    %99 = tpu.dynamic_rotate %96 by %c124_i32_32 dim 1 : vector<8x128xf32>, i32 -> vector<8x128xf32>
    %100 = arith.addf %98, %99 : vector<8x128xf32>
    %c122_i32_33 = arith.constant 122 : i32
    %101 = tpu.dynamic_rotate %94 by %c122_i32_33 dim 1 : vector<8x128xf32>, i32 -> vector<8x128xf32>
    %102 = arith.addf %100, %101 : vector<8x128xf32>
    %103 = arith.mulf %27, %45 : vector<8x128xf32>
    %104 = arith.mulf %27, %27 : vector<8x128xf32>
    %105 = arith.mulf %45, %45 : vector<8x128xf32>
    %106 = arith.addf %104, %105 : vector<8x128xf32>
    %cst = arith.constant 2.000000e+00 : f32
    %107 = vector.broadcast %cst : f32 to vector<8x128xf32>
    %108 = arith.mulf %107, %103 : vector<8x128xf32>
    %cst_34 = arith.constant 2.401000e-01 : f32
    %109 = vector.broadcast %cst_34 : f32 to vector<8x128xf32>
    %110 = arith.addf %108, %109 : vector<8x128xf32>
    %cst_35 = arith.constant 2.401000e-01 : f32
    %111 = vector.broadcast %cst_35 : f32 to vector<8x128xf32>
    %112 = arith.addf %106, %111 : vector<8x128xf32>
    %cst_36 = arith.constant 4.900000e+01 : f32
    %113 = vector.broadcast %cst_36 : f32 to vector<8x128xf32>
    %114 = arith.mulf %113, %102 : vector<8x128xf32>
    %115 = arith.subf %114, %103 : vector<8x128xf32>
    %cst_37 = arith.constant 2.000000e+00 : f32
    %116 = vector.broadcast %cst_37 : f32 to vector<8x128xf32>
    %117 = arith.mulf %116, %115 : vector<8x128xf32>
    %cst_38 = arith.constant 2.116800e+00 : f32
    %118 = vector.broadcast %cst_38 : f32 to vector<8x128xf32>
    %119 = arith.addf %117, %118 : vector<8x128xf32>
    %120 = arith.addf %64, %83 : vector<8x128xf32>
    %cst_39 = arith.constant 4.900000e+01 : f32
    %121 = vector.broadcast %cst_39 : f32 to vector<8x128xf32>
    %122 = arith.mulf %121, %120 : vector<8x128xf32>
    %123 = arith.subf %122, %106 : vector<8x128xf32>
    %cst_40 = arith.constant 2.116800e+00 : f32
    %124 = vector.broadcast %cst_40 : f32 to vector<8x128xf32>
    %125 = arith.addf %123, %124 : vector<8x128xf32>
    %126 = arith.mulf %110, %119 : vector<8x128xf32>
    %127 = arith.mulf %112, %125 : vector<8x128xf32>
    %128 = tpu.reciprocal %127 {approx = true} : vector<8x128xf32> -> vector<8x128xf32>
    %129 = arith.mulf %126, %128 : vector<8x128xf32>
    %130 = tpu.iota {dimensions = array<i32: 1>} : vector<8x128xi32>
    %c10_i32 = arith.constant 10 : i32
    %131 = vector.broadcast %c10_i32 : i32 to vector<8x128xi32>
    %132 = arith.cmpi slt, %130, %131 : vector<8x128xi32>
    %c1_i32 = arith.constant 1 : i32
    %133 = arith.cmpi slt, %arg0, %c1_i32 : i32
    %134 = arith.extui %133 : i1 to i32
    %c0_i32 = arith.constant 0 : i32
    %135 = arith.cmpi ne, %134, %c0_i32 : i32
    scf.if %135 {
      %139 = vector.extract_strided_slice %129 {offsets = [0, 0], sizes = [8, 128], strides = [1, 1]} : vector<8x128xf32> to vector<8x128xf32>
      %cst_43 = arith.constant 0.000000e+00 : f32
      %140 = vector.broadcast %cst_43 : f32 to vector<8x128xf32>
      %141 = arith.select %132, %139, %140 : vector<8x128xi1>, vector<8x128xf32>
      %c0_44 = arith.constant 0 : index
      %c0_45 = arith.constant 0 : index
      %142 = vector.load %arg5[%c0_44, %c0_45] : memref<8x128xf32, #tpu.memory_space<vmem>>, vector<8x128xf32>
      tpu.vector_store %arg5[%c0_44, %c0_45], %141 {strides = array<i32>} : memref<8x128xf32, #tpu.memory_space<vmem>>, vector<8x128xf32>,
    } else {
    }
    %c1_i32_41 = arith.constant 1 : i32
    %136 = arith.cmpi eq, %arg0, %c1_i32_41 : i32
    %137 = arith.extui %136 : i1 to i32
    %c0_i32_42 = arith.constant 0 : i32
    %138 = arith.cmpi ne, %137, %c0_i32_42 : i32
    scf.if %138 {
      %139 = tpu.iota {dimensions = array<i32: 0>} : vector<8x128xi32>
      %c2_i32 = arith.constant 2 : i32
      %140 = vector.broadcast %c2_i32 : i32 to vector<8x128xi32>
      %141 = arith.cmpi slt, %139, %140 : vector<8x128xi32>
      %cst_43 = arith.constant 0.000000e+00 : f32
      %142 = vector.broadcast %cst_43 : f32 to vector<8x128xf32>
      %143 = arith.select %141, %129, %142 : vector<8x128xi1>, vector<8x128xf32>
      %144 = vector.extract_strided_slice %143 {offsets = [0, 0], sizes = [8, 128], strides = [1, 1]} : vector<8x128xf32> to vector<8x128xf32>
      %cst_44 = arith.constant 0.000000e+00 : f32
      %145 = vector.broadcast %cst_44 : f32 to vector<8x128xf32>
      %146 = arith.select %132, %144, %145 : vector<8x128xi1>, vector<8x128xf32>
      %c0_45 = arith.constant 0 : index
      %c0_46 = arith.constant 0 : index
      %147 = vector.load %arg5[%c0_45, %c0_46] : memref<8x128xf32, #tpu.memory_space<vmem>>, vector<8x128xf32>
      tpu.vector_store %arg5[%c0_45, %c0_46], %146 {strides = array<i32>} : memref<8x128xf32, #tpu.memory_space<vmem>>, vector<8x128xf32>,
    } else {
    }
    return
  }
  func.func @transform_0(%arg0: i32) -> (i32, i32) {
    %c0_i32 = arith.constant 0 : i32
    %c0_i32_0 = arith.constant 0 : i32
    return %arg0, %c0_i32 : i32, i32
  }
  func.func @transform_1(%arg0: i32) -> (i32, i32) {
    %c0_i32 = arith.constant 0 : i32
    %c0_i32_0 = arith.constant 0 : i32
    return %arg0, %c0_i32 : i32, i32
  }
  func.func @transform_2(%arg0: i32) -> (i32, i32) {
    %c1_i32 = arith.constant 1 : i32
    %0 = arith.addi %arg0, %c1_i32 : i32
    %c1_i32_0 = arith.constant 1 : i32
    %1 = arith.muli %0, %c1_i32_0 : i32
    %c0_i32 = arith.constant 0 : i32
    %c0_i32_1 = arith.constant 0 : i32
    return %1, %c0_i32 : i32, i32
  }
  func.func @transform_3(%arg0: i32) -> (i32, i32) {
    %c1_i32 = arith.constant 1 : i32
    %0 = arith.addi %arg0, %c1_i32 : i32
    %c1_i32_0 = arith.constant 1 : i32
    %1 = arith.muli %0, %c1_i32_0 : i32
    %c0_i32 = arith.constant 0 : i32
    %c0_i32_1 = arith.constant 0 : i32
    return %1, %c0_i32 : i32, i32
  }
  func.func @transform_4(%arg0: i32) -> (i32, i32) {
    %c0_i32 = arith.constant 0 : i32
    %c0_i32_0 = arith.constant 0 : i32
    return %arg0, %c0_i32 : i32, i32
  }
}

</mosaic_0001>

<llo_original>
// kernel: tpu_custom_call.1
$region0: #{tpu_custom_call.1}
  #allocation0 [shape = 'u32[]', space=smem, size = 0x4, offset = 0x4, fixed_abs, tag = 'smem constant byte address 0x4 - core index']
  #allocation1 [shape = 'u32[72,128]{1,0:T(1,128)}', space=vmem, size = 0x9000, scoped, tag = 'internal scratch']
  #allocation2 [shape = 'f32[16,128]{1,0:T(8,128)}', space=vmem, size = 0x2000, scoped, tag = 'scratch operand']
  #allocation3 [shape = 'f32[16,128]{1,0:T(8,128)}', space=vmem, size = 0x2000, scoped, tag = 'scratch operand']
  %s0 = inlined_call_operand.hbm [shape: f32[24,128], index: 0, kind: input, shape index: {}]
  %s1 = inlined_call_operand.hbm [shape: f32[24,128], index: 1, kind: input, shape index: {}]
  %s2 = inlined_call_operand.hbm [shape: f32[24,128], index: 2, kind: input, shape index: {}]
  %s3 = inlined_call_operand.hbm [shape: f32[24,128], index: 3, kind: input, shape index: {}]
  %s4 = inlined_call_operand.hbm [shape: f32[16,128], index: 4, kind: output, shape index: {}]
  %s5 = sld [smem:[#allocation0]]
  $region73: #{tpu_custom_call.1} parent=0
    _
  %s7 = ssub.s32 1, %s5
  %s8 = scalar_select 0, %s7, %s5
  $region1: #{tpu_custom_call.1} parent=0
    #allocation4 [shape = 'u8[8192]{0}', space=vmem, size = 0x2000, scoped, tag = 'input window, operand 0']
    #allocation5 [shape = 's32[2]{0}', space=sflag, size = 0x8, scoped, tag = 'scoped memory for tpu_custom_call.1']
    #allocation6 [shape = 's32[2]{0}', space=sflag, size = 0x8, scoped, tag = 'scoped memory for tpu_custom_call.1']
    #allocation7 [shape = 'u8[8192]{0}', space=vmem, size = 0x2000, scoped, tag = 'input window, operand 1']
    #allocation8 [shape = 's32[2]{0}', space=sflag, size = 0x8, scoped, tag = 'scoped memory for tpu_custom_call.1']
    #allocation9 [shape = 'u8[8192]{0}', space=vmem, size = 0x2000, scoped, tag = 'input window, operand 2']
    #allocation10 [shape = 'u8[8192]{0}', space=vmem, size = 0x2000, scoped, tag = 'input window, operand 3']
    #allocation11 [shape = 's32[2]{0}', space=sflag, size = 0x8, scoped, tag = 'scoped memory for tpu_custom_call.1']
    #allocation12 [shape = 'u8[8192]{0}', space=vmem, size = 0x2000, scoped, tag = 'output window, operand 0']
    %9 = vsyncpa [#allocation5], 0
    %s10 = scalar_lea.sflag [#allocation5], 1
    %11 = vsyncpa %s10, 0
    %12 = vsyncpa [#allocation8], 0
    %s13 = scalar_lea.sflag [#allocation8], 1
    %14 = vsyncpa %s13, 0
    %15 = vsyncpa [#allocation11], 0
    %s16 = scalar_lea.sflag [#allocation11], 1
    %17 = vsyncpa %s16, 0
    %18 = vsyncpa [#allocation6], 0
    %s19 = scalar_lea.sflag [#allocation6], 1
    %20 = vsyncpa %s19, 0
    loop: start=0, step=1, limit=4
    $region2: #{tpu_custom_call.1} parent=1 // loop_pre_header
      _
    $region3: #{tpu_custom_call.1} parent=1 // loop_header
      %s22 = sphi 0, %s26
      %p23 = scmp.ge.s32.totalorder %s22, 4
      %s32 = sphi 0, %s34
      %s35 = sphi 0, %s32
      %s36 = sphi 0, %s35
      %s52 = sphi 0, %s36
      %s58 = sphi 0, %s60
      %s61 = sphi 0, %s58
      %s62 = sphi 0, %s61
      %s78 = sphi 0, %s62
      %s86 = sphi 0, %s88
      %s89 = sphi 0, %s86
      %s90 = sphi 0, %s89
      %s106 = sphi 0, %s90
      %s114 = sphi 0, %s116
      %s117 = sphi 0, %s114
      %s118 = sphi 0, %s117
      %s134 = sphi 0, %s118
      %s140 = sphi 0, %s142
      %s143 = sphi 0, %s140
      %s144 = sphi 0, %s143
      %s160 = sphi 0, %s144
    $region4: #{tpu_custom_call.1} parent=1 // loop_header_branch
      %25 = sbr.rel (%p23) target = $region8
    $region5: #{tpu_custom_call.1} parent=1 // loop_body
      %s27 = ssub.s32 %s22, 1
      %s28 = ssub.s32 %s22, 2
      %s29 = sadd.s32 %s22, 1
      %s30 = ssub.s32 %s22, %s29
      %p31 = scmp.eq.s32.totalorder %s30, 0
      %s33 = sadd.s32 %s32, 1
      %s34 = scalar_select %p31, %s32, %s33
      %p37 = pneg %p31
      %p38 = scmp.eq.s32.totalorder %s22, 1
      %p39 = por %p37, %p38
      %p40 = scmp.ne.s32.totalorder %s32, %s35
      %p41 = scmp.eq.s32.totalorder %s22, 0
      %p42 = por %p40, %p41
      %p43 = scmp.ne.s32.totalorder %s32, %s35
      %p44 = scmp.eq.s32.totalorder %s27, 1
      %p45 = por %p43, %p44
      %p46 = scmp.ne.s32.totalorder %s35, %s36
      %p47 = scmp.eq.s32.totalorder %s27, 0
      %p48 = por %p46, %p47
      %p49 = scmp.ne.s32.totalorder %s35, %s36
      %p50 = scmp.eq.s32.totalorder %s28, 1
      %p51 = por %p49, %p50
      %p53 = scmp.ne.s32.totalorder %s36, %s52
      %p54 = scmp.eq.s32.totalorder %s28, 0
      %p55 = por %p53, %p54
      %s56 = ssub.s32 %s22, %s29
      %p57 = scmp.eq.s32.totalorder %s56, 0
      %s59 = sadd.s32 %s58, 1
      %s60 = scalar_select %p57, %s58, %s59
      %p63 = pneg %p57
      %p64 = scmp.eq.s32.totalorder %s22, 1
      %p65 = por %p63, %p64
      %p66 = scmp.ne.s32.totalorder %s58, %s61
      %p67 = scmp.eq.s32.totalorder %s22, 0
      %p68 = por %p66, %p67
      %p69 = scmp.ne.s32.totalorder %s58, %s61
      %p70 = scmp.eq.s32.totalorder %s27, 1
      %p71 = por %p69, %p70
      %p72 = scmp.ne.s32.totalorder %s61, %s62
      %p73 = scmp.eq.s32.totalorder %s27, 0
      %p74 = por %p72, %p73
      %p75 = scmp.ne.s32.totalorder %s61, %s62
      %p76 = scmp.eq.s32.totalorder %s28, 1
      %p77 = por %p75, %p76
      %p79 = scmp.ne.s32.totalorder %s62, %s78
      %p80 = scmp.eq.s32.totalorder %s28, 0
      %p81 = por %p79, %p80
      %s82 = sadd.s32 %s22, 1
      %s83 = sadd.s32 %s29, 1
      %s84 = ssub.s32 %s82, %s83
      %p85 = scmp.eq.s32.totalorder %s84, 0
      %s87 = sadd.s32 %s86, 1
      %s88 = scalar_select %p85, %s86, %s87
      %p91 = pneg %p85
      %p92 = scmp.eq.s32.totalorder %s22, 1
      %p93 = por %p91, %p92
      %p94 = scmp.ne.s32.totalorder %s86, %s89
      %p95 = scmp.eq.s32.totalorder %s22, 0
      %p96 = por %p94, %p95
      %p97 = scmp.ne.s32.totalorder %s86, %s89
      %p98 = scmp.eq.s32.totalorder %s27, 1
      %p99 = por %p97, %p98
      %p100 = scmp.ne.s32.totalorder %s89, %s90
      %p101 = scmp.eq.s32.totalorder %s27, 0
      %p102 = por %p100, %p101
      %p103 = scmp.ne.s32.totalorder %s89, %s90
      %p104 = scmp.eq.s32.totalorder %s28, 1
      %p105 = por %p103, %p104
      %p107 = scmp.ne.s32.totalorder %s90, %s106
      %p108 = scmp.eq.s32.totalorder %s28, 0
      %p109 = por %p107, %p108
      %s110 = sadd.s32 %s22, 1
      %s111 = sadd.s32 %s29, 1
      %s112 = ssub.s32 %s110, %s111
      %p113 = scmp.eq.s32.totalorder %s112, 0
      %s115 = sadd.s32 %s114, 1
      %s116 = scalar_select %p113, %s114, %s115
      %p119 = pneg %p113
      %p120 = scmp.eq.s32.totalorder %s22, 1
      %p121 = por %p119, %p120
      %p122 = scmp.ne.s32.totalorder %s114, %s117
      %p123 = scmp.eq.s32.totalorder %s22, 0
      %p124 = por %p122, %p123
      %p125 = scmp.ne.s32.totalorder %s114, %s117
      %p126 = scmp.eq.s32.totalorder %s27, 1
      %p127 = por %p125, %p126
      %p128 = scmp.ne.s32.totalorder %s117, %s118
      %p129 = scmp.eq.s32.totalorder %s27, 0
      %p130 = por %p128, %p129
      %p131 = scmp.ne.s32.totalorder %s117, %s118
      %p132 = scmp.eq.s32.totalorder %s28, 1
      %p133 = por %p131, %p132
      %p135 = scmp.ne.s32.totalorder %s118, %s134
      %p136 = scmp.eq.s32.totalorder %s28, 0
      %p137 = por %p135, %p136
      %s138 = ssub.s32 %s22, %s29
      %p139 = scmp.eq.s32.totalorder %s138, 0
      %s141 = sadd.s32 %s140, 1
      %s142 = scalar_select %p139, %s140, %s141
      %p145 = pneg %p139
      %p146 = scmp.eq.s32.totalorder %s22, 1
      %p147 = por %p145, %p146
      %p148 = scmp.ne.s32.totalorder %s140, %s143
      %p149 = scmp.eq.s32.totalorder %s22, 0
      %p150 = por %p148, %p149
      %p151 = scmp.ne.s32.totalorder %s140, %s143
      %p152 = scmp.eq.s32.totalorder %s27, 1
      %p153 = por %p151, %p152
      %p154 = scmp.ne.s32.totalorder %s143, %s144
      %p155 = scmp.eq.s32.totalorder %s27, 0
      %p156 = por %p154, %p155
      %p157 = scmp.ne.s32.totalorder %s143, %s144
      %p158 = scmp.eq.s32.totalorder %s28, 1
      %p159 = por %p157, %p158
      %p161 = scmp.ne.s32.totalorder %s144, %s160
      %p162 = scmp.eq.s32.totalorder %s28, 0
      %p163 = por %p161, %p162
      %p164 = scmp.le.s32.totalorder 1, %s22
      %p165 = scmp.lt.s32.totalorder %s22, 3
      %p166 = pnand %p164, %p165
      %p167 = pneg %p166
      // Predicated region
      $region9: #{tpu_custom_call.1} parent=5 // pred_check
        _
      $region10: #{tpu_custom_call.1} parent=5 // pred_check_branch
        %169 = sbr.rel (%p166) target = $region12
      $region11: #{tpu_custom_call.1} parent=5 // pred_region
        %s170 = ssub.s32 %s22, 1
      $region12: #{tpu_custom_call.1} parent=5 // pred_fallthru
        _
      %p171 = scmp.lt.s32.totalorder %s22, 2
      // Predicated region
      $region13: #{tpu_custom_call.1} parent=5 // pred_check
        %p172 = pneg %p171
      $region14: #{tpu_custom_call.1} parent=5 // pred_check_branch
        %174 = sbr.rel (%p172) target = $region16
      $region15: #{tpu_custom_call.1} parent=5 // pred_region
        // Predicated region
        $region17: #{tpu_custom_call.1} parent=15 // pred_check
          %p175 = pneg %p42
        $region18: #{tpu_custom_call.1} parent=15 // pred_check_branch
          %177 = sbr.rel (%p175) target = $region20
        $region19: #{tpu_custom_call.1} parent=15 // pred_region
          %s178 = sand.u32 %s32, 1
          %s179 = scalar_lea.sflag [#allocation5], %s178
          %s180 = sand.u32 %s32, 1
          %s181 = smul.addr %s180, 8
          %s182 = scalar_lea.vmem [#allocation4], %s181
          %184 = vsyncadd %s179, 0
          %s185 = smul.addr %s22, 8
          %s186 = scalar_lea.hbm %s0, %s185
          %s188 = sshll.u32 %s186, 4
          %s189 = int_to_ptr.hbm [resolvable:$true] %s188
          %s190 = sshll.u32 %s182, 4
          %s191 = int_to_ptr.vmem [resolvable:$true] %s190
          %193 = dma.hbm_to_vmem [thread:$0]  %s189, 128, %s191, %s179
        $region20: #{tpu_custom_call.1} parent=15 // pred_fallthru
          _
        // Predicated region
        $region21: #{tpu_custom_call.1} parent=15 // pred_check
          %p194 = pneg %p68
        $region22: #{tpu_custom_call.1} parent=15 // pred_check_branch
          %196 = sbr.rel (%p194) target = $region24
        $region23: #{tpu_custom_call.1} parent=15 // pred_region
          %s197 = sand.u32 %s22, 1
          %s198 = scalar_lea.sflag [#allocation8], %s197
          %s199 = sand.u32 %s58, 1
          %s200 = smul.addr %s199, 8
          %s201 = scalar_lea.vmem [#allocation7], %s200
          %203 = vsyncadd %s198, 0
          %s204 = smul.addr %s22, 8
          %s205 = scalar_lea.hbm %s1, %s204
          %s207 = sshll.u32 %s205, 4
          %s208 = int_to_ptr.hbm [resolvable:$true] %s207
          %s209 = sshll.u32 %s201, 4
          %s210 = int_to_ptr.vmem [resolvable:$true] %s209
          %212 = dma.hbm_to_vmem [thread:$0]  %s208, 128, %s210, %s198
        $region24: #{tpu_custom_call.1} parent=15 // pred_fallthru
          _
        // Predicated region
        $region25: #{tpu_custom_call.1} parent=15 // pred_check
          %p213 = pneg %p96
        $region26: #{tpu_custom_call.1} parent=15 // pred_check_branch
          %215 = sbr.rel (%p213) target = $region28
        $region27: #{tpu_custom_call.1} parent=15 // pred_region
          %s216 = sand.u32 %s22, 1
          %s217 = scalar_lea.sflag [#allocation8], %s216
          %s218 = sand.u32 %s86, 1
          %s219 = smul.addr %s218, 8
          %s220 = scalar_lea.vmem [#allocation9], %s219
          %s221 = sadd.s32 %s22, 1
          %223 = vsyncadd %s217, 0
          %s224 = smul.addr %s221, 8
          %s225 = scalar_lea.hbm %s2, %s224
          %s227 = sshll.u32 %s225, 4
          %s228 = int_to_ptr.hbm [resolvable:$true] %s227
          %s229 = sshll.u32 %s220, 4
          %s230 = int_to_ptr.vmem [resolvable:$true] %s229
          %232 = dma.hbm_to_vmem [thread:$0]  %s228, 128, %s230, %s217
        $region28: #{tpu_custom_call.1} parent=15 // pred_fallthru
          _
        // Predicated region
        $region29: #{tpu_custom_call.1} parent=15 // pred_check
          %p233 = pneg %p124
        $region30: #{tpu_custom_call.1} parent=15 // pred_check_branch
          %235 = sbr.rel (%p233) target = $region32
        $region31: #{tpu_custom_call.1} parent=15 // pred_region
          %s236 = sand.u32 %s114, 1
          %s237 = scalar_lea.sflag [#allocation11], %s236
          %s238 = sand.u32 %s114, 1
          %s239 = smul.addr %s238, 8
          %s240 = scalar_lea.vmem [#allocation10], %s239
          %s241 = sadd.s32 %s22, 1
          %243 = vsyncadd %s237, 0
          %s244 = smul.addr %s241, 8
          %s245 = scalar_lea.hbm %s3, %s244
          %s247 = sshll.u32 %s245, 4
          %s248 = int_to_ptr.hbm [resolvable:$true] %s247
          %s249 = sshll.u32 %s240, 4
          %s250 = int_to_ptr.vmem [resolvable:$true] %s249
          %252 = dma.hbm_to_vmem [thread:$0]  %s248, 128, %s250, %s237
        $region32: #{tpu_custom_call.1} parent=15 // pred_fallthru
          _
      $region16: #{tpu_custom_call.1} parent=5 // pred_fallthru
        _
      %p253 = scmp.le.s32.totalorder 1, %s22
      %p254 = scmp.lt.s32.totalorder %s22, 3
      %p255 = pnand %p253, %p254
      %p256 = pneg %p255
      // Predicated region
      $region33: #{tpu_custom_call.1} parent=5 // pred_check
        _
      $region34: #{tpu_custom_call.1} parent=5 // pred_check_branch
        %258 = sbr.rel (%p255) target = $region36
      $region35: #{tpu_custom_call.1} parent=5 // pred_region
        %s259 = ssub.s32 %s22, 1
        %s260 = sand.u32 %s35, 1
        %s261 = scalar_lea.sflag [#allocation5], %s260
        %s262 = sand.u32 %s35, 1
        %s263 = smul.addr %s262, 8
        %s264 = scalar_lea.vmem [#allocation4], %s263
        // Predicated region
        $region37: #{tpu_custom_call.1} parent=35 // pred_check
          %p265 = pneg %p48
        $region38: #{tpu_custom_call.1} parent=35 // pred_check_branch
          %267 = sbr.rel (%p265) target = $region40
        $region39: #{tpu_custom_call.1} parent=35 // pred_region
          %269 = dma.done %s261, 128
        $region40: #{tpu_custom_call.1} parent=35 // pred_fallthru
          _
        %s270 = sand.u32 %s27, 1
        %s271 = scalar_lea.sflag [#allocation8], %s270
        %s272 = sand.u32 %s61, 1
        %s273 = smul.addr %s272, 8
        %s274 = scalar_lea.vmem [#allocation7], %s273
        // Predicated region
        $region41: #{tpu_custom_call.1} parent=35 // pred_check
          %p275 = pneg %p74
        $region42: #{tpu_custom_call.1} parent=35 // pred_check_branch
          %277 = sbr.rel (%p275) target = $region44
        $region43: #{tpu_custom_call.1} parent=35 // pred_region
          %279 = dma.done %s271, 128
        $region44: #{tpu_custom_call.1} parent=35 // pred_fallthru
          _
        %s280 = sand.u32 %s27, 1
        %s281 = scalar_lea.sflag [#allocation8], %s280
        %s282 = sand.u32 %s89, 1
        %s283 = smul.addr %s282, 8
        %s284 = scalar_lea.vmem [#allocation9], %s283
        // Predicated region
        $region45: #{tpu_custom_call.1} parent=35 // pred_check
          %p285 = pneg %p102
        $region46: #{tpu_custom_call.1} parent=35 // pred_check_branch
          %287 = sbr.rel (%p285) target = $region48
        $region47: #{tpu_custom_call.1} parent=35 // pred_region
          %289 = dma.done %s281, 128
        $region48: #{tpu_custom_call.1} parent=35 // pred_fallthru
          _
        %s290 = sand.u32 %s117, 1
        %s291 = scalar_lea.sflag [#allocation11], %s290
        %s292 = sand.u32 %s117, 1
        %s293 = smul.addr %s292, 8
        %s294 = scalar_lea.vmem [#allocation10], %s293
        // Predicated region
        $region49: #{tpu_custom_call.1} parent=35 // pred_check
          %p295 = pneg %p130
        $region50: #{tpu_custom_call.1} parent=35 // pred_check_branch
          %297 = sbr.rel (%p295) target = $region52
        $region51: #{tpu_custom_call.1} parent=35 // pred_region
          %299 = dma.done %s291, 128
        $region52: #{tpu_custom_call.1} parent=35 // pred_fallthru
          _
        %s300 = sand.u32 %s35, 1
        %s301 = scalar_lea.sflag [#allocation5], %s300
        %s302 = sand.u32 %s35, 1
        %s303 = smul.addr %s302, 8
        %s304 = scalar_lea.vmem [#allocation4], %s303
        %p305 = pneg %p48
        %p306 = pneg %p45
        %s307 = sand.u32 %s27, 1
        %s308 = scalar_lea.sflag [#allocation8], %s307
        %s309 = sand.u32 %s61, 1
        %s310 = smul.addr %s309, 8
        %s311 = scalar_lea.vmem [#allocation7], %s310
        %p312 = pneg %p74
        %p313 = pneg %p71
        %s314 = sand.u32 %s27, 1
        %s315 = scalar_lea.sflag [#allocation8], %s314
        %s316 = sand.u32 %s89, 1
        %s317 = smul.addr %s316, 8
        %s318 = scalar_lea.vmem [#allocation9], %s317
        %p319 = pneg %p102
        %p320 = pneg %p99
        %s321 = sand.u32 %s117, 1
        %s322 = scalar_lea.sflag [#allocation11], %s321
        %s323 = sand.u32 %s117, 1
        %s324 = smul.addr %s323, 8
        %s325 = scalar_lea.vmem [#allocation10], %s324
        %p326 = pneg %p130
        %p327 = pneg %p127
        %p328 = pneg %p156
        %p329 = pneg %p153
        %s330 = sand.u32 %s143, 1
        %s331 = scalar_lea.sflag [#allocation6], %s330
        %s332 = sand.u32 %s143, 1
        %s333 = smul.addr %s332, 8
        %s334 = scalar_lea.vmem [#allocation12], %s333
        %s335 = sadd.s32 %s27, 1
        %s336 = sadd.s32 %s27, 1
        %v337 = vld [vmem:[%s264] sm:$0xff]
        %338 = vst [vmem:[#allocation2] sm:$0xff] %v337
        %v339 = vld [vmem:[%s284] sm:$0xff]
        %340 = vst [vmem:[#allocation2 + $0x8] sm:$0xff] %v339
        %v341 = vld [vmem:[%s274] sm:$0xff]
        %342 = vst [vmem:[#allocation3] sm:$0xff] %v341
        %v343 = vld [vmem:[%s294] sm:$0xff]
        %344 = vst [vmem:[#allocation3 + $0x8] sm:$0xff] %v343
        %v345 = vld [vmem:[#allocation2] sm:$0xff]
        %v346 = vld [vmem:[#allocation2 + $0x8] sm:$0xff]
        %v347 = vld [vmem:[#allocation3] sm:$0xff]
        %v348 = vld [vmem:[#allocation3 + $0x8] sm:$0xff]
        %vm351 = vcmask 1046528
        %v352 = vrot.slane %v345, 1
        %v353 = vrot.slane %v346, 1
        %v354 = vsel %vm351, %v352, %v353
        %v357 = vadd.f32 %v345, %v354
        %v358 = vadd.f32 %v346, %v353
        %vm361 = vcmask 1045504
        %v362 = vrot.slane %v357, 2
        %v363 = vrot.slane %v358, 2
        %v364 = vsel %vm361, %v362, %v363
        %v366 = vadd.f32 %v357, %v364
        %vm367 = vcmask 1043456
        %v368 = vrot.slane %v357, 4
        %v369 = vrot.slane %v358, 4
        %v370 = vsel %vm367, %v368, %v369
        %v372 = vadd.f32 %v366, %v370
        %vm373 = vcmask 1041408
        %v374 = vrot.slane %v345, 6
        %v375 = vrot.slane %v346, 6
        %v376 = vsel %vm373, %v374, %v375
        %v378 = vadd.f32 %v372, %v376
        %379 = vrot.lane.b32.xlu0 %v378, 127
        %v380 = vpop.permute.xlu0 %379
        %v381 = vadd.f32 %v378, %v380
        %382 = vrot.lane.b32.xlu0 %v381, 126
        %v383 = vpop.permute.xlu0 %382
        %v384 = vadd.f32 %v381, %v383
        %385 = vrot.lane.b32.xlu0 %v381, 124
        %v386 = vpop.permute.xlu0 %385
        %v387 = vadd.f32 %v384, %v386
        %388 = vrot.lane.b32.xlu0 %v378, 122
        %v389 = vpop.permute.xlu0 %388
        %v390 = vadd.f32 %v387, %v389
        %v393 = vrot.slane %v347, 1
        %v394 = vrot.slane %v348, 1
        %v395 = vsel %vm351, %v393, %v394
        %v398 = vadd.f32 %v347, %v395
        %v399 = vadd.f32 %v348, %v394
        %v402 = vrot.slane %v398, 2
        %v403 = vrot.slane %v399, 2
        %v404 = vsel %vm361, %v402, %v403
        %v406 = vadd.f32 %v398, %v404
        %v407 = vrot.slane %v398, 4
        %v408 = vrot.slane %v399, 4
        %v409 = vsel %vm367, %v407, %v408
        %v411 = vadd.f32 %v406, %v409
        %v412 = vrot.slane %v347, 6
        %v413 = vrot.slane %v348, 6
        %v414 = vsel %vm373, %v412, %v413
        %v416 = vadd.f32 %v411, %v414
        %417 = vrot.lane.b32.xlu0 %v416, 127
        %v418 = vpop.permute.xlu0 %417
        %v419 = vadd.f32 %v416, %v418
        %420 = vrot.lane.b32.xlu0 %v419, 126
        %v421 = vpop.permute.xlu0 %420
        %v422 = vadd.f32 %v419, %v421
        %423 = vrot.lane.b32.xlu0 %v419, 124
        %v424 = vpop.permute.xlu0 %423
        %v425 = vadd.f32 %v422, %v424
        %426 = vrot.lane.b32.xlu0 %v416, 122
        %v427 = vpop.permute.xlu0 %426
        %v428 = vadd.f32 %v425, %v427
        %v429 = vmul.f32 %v345, %v345
        %v430 = vmul.f32 %v346, %v346
        %v433 = vrot.slane %v429, 1
        %v434 = vrot.slane %v430, 1
        %v435 = vsel %vm351, %v433, %v434
        %v438 = vadd.f32 %v429, %v435
        %v439 = vadd.f32 %v430, %v434
        %v442 = vrot.slane %v438, 2
        %v443 = vrot.slane %v439, 2
        %v444 = vsel %vm361, %v442, %v443
        %v446 = vadd.f32 %v438, %v444
        %v447 = vrot.slane %v438, 4
        %v448 = vrot.slane %v439, 4
        %v449 = vsel %vm367, %v447, %v448
        %v451 = vadd.f32 %v446, %v449
        %v452 = vrot.slane %v429, 6
        %v453 = vrot.slane %v430, 6
        %v454 = vsel %vm373, %v452, %v453
        %v456 = vadd.f32 %v451, %v454
        %457 = vrot.lane.b32.xlu0 %v456, 127
        %v458 = vpop.permute.xlu0 %457
        %v459 = vadd.f32 %v456, %v458
        %460 = vrot.lane.b32.xlu0 %v459, 126
        %v461 = vpop.permute.xlu0 %460
        %v462 = vadd.f32 %v459, %v461
        %463 = vrot.lane.b32.xlu0 %v459, 124
        %v464 = vpop.permute.xlu0 %463
        %v465 = vadd.f32 %v462, %v464
        %466 = vrot.lane.b32.xlu0 %v456, 122
        %v467 = vpop.permute.xlu0 %466
        %v468 = vadd.f32 %v465, %v467
        %v469 = vmul.f32 %v347, %v347
        %v470 = vmul.f32 %v348, %v348
        %v473 = vrot.slane %v469, 1
        %v474 = vrot.slane %v470, 1
        %v475 = vsel %vm351, %v473, %v474
        %v478 = vadd.f32 %v469, %v475
        %v479 = vadd.f32 %v470, %v474
        %v482 = vrot.slane %v478, 2
        %v483 = vrot.slane %v479, 2
        %v484 = vsel %vm361, %v482, %v483
        %v486 = vadd.f32 %v478, %v484
        %v487 = vrot.slane %v478, 4
        %v488 = vrot.slane %v479, 4
        %v489 = vsel %vm367, %v487, %v488
        %v491 = vadd.f32 %v486, %v489
        %v492 = vrot.slane %v469, 6
        %v493 = vrot.slane %v470, 6
        %v494 = vsel %vm373, %v492, %v493
        %v496 = vadd.f32 %v491, %v494
        %497 = vrot.lane.b32.xlu0 %v496, 127
        %v498 = vpop.permute.xlu0 %497
        %v499 = vadd.f32 %v496, %v498
        %500 = vrot.lane.b32.xlu0 %v499, 126
        %v501 = vpop.permute.xlu0 %500
        %v502 = vadd.f32 %v499, %v501
        %503 = vrot.lane.b32.xlu0 %v499, 124
        %v504 = vpop.permute.xlu0 %503
        %v505 = vadd.f32 %v502, %v504
        %506 = vrot.lane.b32.xlu0 %v496, 122
        %v507 = vpop.permute.xlu0 %506
        %v508 = vadd.f32 %v505, %v507
        %v509 = vmul.f32 %v345, %v347
        %v510 = vmul.f32 %v346, %v348
        %v513 = vrot.slane %v509, 1
        %v514 = vrot.slane %v510, 1
        %v515 = vsel %vm351, %v513, %v514
        %v518 = vadd.f32 %v509, %v515
        %v519 = vadd.f32 %v510, %v514
        %v522 = vrot.slane %v518, 2
        %v523 = vrot.slane %v519, 2
        %v524 = vsel %vm361, %v522, %v523
        %v526 = vadd.f32 %v518, %v524
        %v527 = vrot.slane %v518, 4
        %v528 = vrot.slane %v519, 4
        %v529 = vsel %vm367, %v527, %v528
        %v531 = vadd.f32 %v526, %v529
        %v532 = vrot.slane %v509, 6
        %v533 = vrot.slane %v510, 6
        %v534 = vsel %vm373, %v532, %v533
        %v536 = vadd.f32 %v531, %v534
        %537 = vrot.lane.b32.xlu0 %v536, 127
        %v538 = vpop.permute.xlu0 %537
        %v539 = vadd.f32 %v536, %v538
        %540 = vrot.lane.b32.xlu0 %v539, 126
        %v541 = vpop.permute.xlu0 %540
        %v542 = vadd.f32 %v539, %v541
        %543 = vrot.lane.b32.xlu0 %v539, 124
        %v544 = vpop.permute.xlu0 %543
        %v545 = vadd.f32 %v542, %v544
        %546 = vrot.lane.b32.xlu0 %v536, 122
        %v547 = vpop.permute.xlu0 %546
        %v548 = vadd.f32 %v545, %v547
        %v549 = vmul.f32 %v390, %v428
        %v550 = vmul.f32 %v390, %v390
        %v551 = vmul.f32 %v428, %v428
        %v552 = vadd.f32 %v550, %v551
        %v553 = vmul.f32 %v549, 2.0
        %v554 = vadd.f32 %v553, 0.2401
        %v555 = vadd.f32 %v552, 0.2401
        %v556 = vmul.f32 %v548, 49.0
        %v557 = vsub.f32 %v556, %v549
        %v558 = vmul.f32 %v557, 2.0
        %v559 = vadd.f32 %v558, 2.1168
        %v560 = vadd.f32 %v468, %v508
        %v561 = vmul.f32 %v560, 49.0
        %v562 = vsub.f32 %v561, %v552
        %v563 = vadd.f32 %v562, 2.1168
        %v564 = vmul.f32 %v554, %v559
        %v565 = vmul.f32 %v555, %v563
        %v566 = vrcp.pop %v565
        %v567 = vmul.f32 %v564, %v566
        %v568 = vlaneseq
        %v569 = vand.u32 %v568, 127
        %vm570 = vcmp.lt.s32.totalorder %v569, 10
        %p571 = scmp.lt.s32.totalorder %s27, 1
        // Predicated region
        $region53: #{tpu_custom_call.1} parent=35 // pred_check
          %p572 = pneg %p571
        $region54: #{tpu_custom_call.1} parent=35 // pred_check_branch
          %574 = sbr.rel (%p572) target = $region56
        $region55: #{tpu_custom_call.1} parent=35 // pred_region
          %v575 = vsel %vm570, %v567, 0.0
          %576 = vst [vmem:[%s334] sm:$0xff] %v575
        $region56: #{tpu_custom_call.1} parent=35 // pred_fallthru
          _
        %p577 = scmp.eq.s32.totalorder %s27, 1
        // Predicated region
        $region57: #{tpu_custom_call.1} parent=35 // pred_check
          %p578 = pneg %p577
        $region58: #{tpu_custom_call.1} parent=35 // pred_check_branch
          %580 = sbr.rel (%p578) target = $region60
        $region59: #{tpu_custom_call.1} parent=35 // pred_region
          %v581 = vlaneseq
          %v582 = vshrl.u32 %v581, 7
          %vm583 = vcmp.lt.s32.totalorder %v582, 2
          %v584 = vsel %vm583, %v567, 0.0
          %v585 = vsel %vm570, %v584, 0.0
          %586 = vst [vmem:[%s334] sm:$0xff] %v585
        $region60: #{tpu_custom_call.1} parent=35 // pred_fallthru
          _
        %s587 = sand.u32 %s143, 1
        %s588 = scalar_lea.sflag [#allocation6], %s587
        %s589 = sand.u32 %s143, 1
        %s590 = smul.addr %s589, 8
        %s591 = scalar_lea.vmem [#allocation12], %s590
        // Predicated region
        $region61: #{tpu_custom_call.1} parent=35 // pred_check
          %p592 = pneg %p153
        $region62: #{tpu_custom_call.1} parent=35 // pred_check_branch
          %594 = sbr.rel (%p592) target = $region64
        $region63: #{tpu_custom_call.1} parent=35 // pred_region
          %596 = vsyncadd %s588, 0
          %s597 = smul.addr %s27, 8
          %s598 = scalar_lea.hbm %s4, %s597
          %s600 = sshll.u32 %s591, 4
          %s601 = int_to_ptr.vmem [resolvable:$true] %s600
          %s602 = sshll.u32 %s598, 4
          %s603 = int_to_ptr.hbm [resolvable:$true] %s602
          %605 = dma.vmem_to_hbm [thread:$0]  %s601, 128, %s603, %s588
        $region64: #{tpu_custom_call.1} parent=35 // pred_fallthru
          _
      $region36: #{tpu_custom_call.1} parent=5 // pred_fallthru
        _
      %p606 = scmp.le.s32.totalorder 2, %s22
      // Predicated region
      $region65: #{tpu_custom_call.1} parent=5 // pred_check
        %p607 = pneg %p606
      $region66: #{tpu_custom_call.1} parent=5 // pred_check_branch
        %609 = sbr.rel (%p607) target = $region68
      $region67: #{tpu_custom_call.1} parent=5 // pred_region
        %s610 = ssub.s32 %s22, 2
        // Predicated region
        $region69: #{tpu_custom_call.1} parent=67 // pred_check
          %p611 = pneg %p159
        $region70: #{tpu_custom_call.1} parent=67 // pred_check_branch
          %613 = sbr.rel (%p611) target = $region72
        $region71: #{tpu_custom_call.1} parent=67 // pred_region
          %s614 = sand.u32 %s144, 1
          %s615 = scalar_lea.sflag [#allocation6], %s614
          %s616 = sand.u32 %s144, 1
          %s617 = smul.addr %s616, 8
          %s618 = scalar_lea.vmem [#allocation12], %s617
          %620 = dma.done %s615, 128
        $region72: #{tpu_custom_call.1} parent=67 // pred_fallthru
          _
      $region68: #{tpu_custom_call.1} parent=5 // pred_fallthru
        _
    $region6: #{tpu_custom_call.1} parent=1 // loop_footer
      %s26 = sadd.s32 1, %s22
    $region7: #{tpu_custom_call.1} parent=1 // loop_footer_branch
      %21 = sbr.rel target = $region3
    $region8: #{tpu_custom_call.1} parent=1 // loop_exit
      _
    %621 = vsyncpa [#allocation5], 1
    %s622 = scalar_lea.sflag [#allocation5], 1
    %623 = vsyncpa %s622, 1
    %624 = vsyncpa [#allocation8], 1
    %s625 = scalar_lea.sflag [#allocation8], 1
    %626 = vsyncpa %s625, 1
    %627 = vsyncpa [#allocation11], 1
    %s628 = scalar_lea.sflag [#allocation11], 1
    %629 = vsyncpa %s628, 1
    %630 = vsyncpa [#allocation6], 1
    %s631 = scalar_lea.sflag [#allocation6], 1
    %632 = vsyncpa %s631, 1

</llo_original>
